<compile_context>
chip_gen: v7x
topology: tpu7x:2x2x1
jax: 0.10.0
libtpu: 0.0.40
codegen_flags: <defaults>
</compile_context>

<pallas_src>
import functools

import jax
import jax.numpy as jnp
from jax.experimental import pallas as pl
from jax.experimental.pallas import tpu as pltpu

EPS = 1e-5                                 # torch.nn.LayerNorm default
_LANES = 128
_TARGET_BLOCK_BYTES = 2 * 1024 * 1024      # ~2 MiB input block ≈ HBM roofline
_MAX_TILE_ROWS = 8192
_VMEM_LIMIT_BYTES = 32 * 1024 * 1024       # safe scoped limit on v5e/v6e/v7x


def _sublane_pack(dtype):
    return {1: 32, 2: 16, 4: 8}.get(jnp.dtype(dtype).itemsize, 8)


def _round_up(x, m):
    return ((x + m - 1) // m) * m


def _pick_tile_rows(n_rows, row_bytes, dtype):
    pack = _sublane_pack(dtype)
    t = max(pack, _TARGET_BLOCK_BYTES // max(row_bytes, 1))
    t = max(pack, (t // pack) * pack)
    t = min(t, _MAX_TILE_ROWS)
    # Keep >= 2 grid steps when the input is big enough (v7x megacore).
    t = min(t, max(pack, _round_up(pl.cdiv(n_rows, 2), pack)))
    return t


def _layernorm_kernel(x_ref, w_ref, b_ref, o_ref):
    """Generic path: one logical row per block row (last dim = D)."""
    x = x_ref[...].astype(jnp.float32)
    inv_d = 1.0 / x.shape[-1]
    mean = jnp.sum(x, axis=-1, keepdims=True) * inv_d
    centered = x - mean
    var = jnp.sum(centered * centered, axis=-1, keepdims=True) * inv_d
    inv = jax.lax.rsqrt(var + EPS)
    y = centered * inv * w_ref[...] + b_ref[...]
    o_ref[...] = y.astype(o_ref.dtype)


def _layernorm_packed_kernel(x_ref, w_ref, b_ref, o_ref, *, d, pack):
    """Lane-dense path for D < 128: `pack` logical rows per 128-lane slab row.

    The block last dim is pack*D (a multiple of 128), so loads/stores are
    full-width.  Each group of D lanes is one logical row and is normalized
    independently with exact f32 arithmetic.
    """
    x = x_ref[...].astype(jnp.float32)          # (T, pack*d)
    inv_d = 1.0 / d
    outs = []
    for g in range(pack):                       # pack is small & static
        xg = x[:, g * d:(g + 1) * d]            # (T, d)
        mean = jnp.sum(xg, axis=-1, keepdims=True) * inv_d
        c = xg - mean
        var = jnp.sum(c * c, axis=-1, keepdims=True) * inv_d
        outs.append(c * jax.lax.rsqrt(var + EPS))
    y = jnp.concatenate(outs, axis=-1) * w_ref[...] + b_ref[...]
    o_ref[...] = y.astype(o_ref.dtype)


def _run(kernel, x2, w2, b2, tile_rows, n_logical_rows, d, itemsize):
    rows, width = x2.shape
    grid = (pl.cdiv(rows, tile_rows),)
    cost = pl.CostEstimate(
        flops=7 * n_logical_rows * d,
        transcendentals=n_logical_rows,
        bytes_accessed=2 * rows * width * itemsize + 2 * width * 4,
    )
    return pl.pallas_call(
        kernel,
        out_shape=jax.ShapeDtypeStruct((rows, width), x2.dtype),
        grid_spec=pltpu.PrefetchScalarGridSpec(
            num_scalar_prefetch=0,
            grid=grid,
            in_specs=[
                pl.BlockSpec((tile_rows, width), lambda i: (i, 0)),
                pl.BlockSpec((1, width), lambda i: (0, 0)),
                pl.BlockSpec((1, width), lambda i: (0, 0)),
            ],
            out_specs=pl.BlockSpec((tile_rows, width), lambda i: (i, 0)),
        ),
        compiler_params=pltpu.CompilerParams(
            dimension_semantics=("parallel",),
            vmem_limit_bytes=_VMEM_LIMIT_BYTES,
        ),
        cost_estimate=cost,
    )(x2, w2, b2)


@jax.jit
def layer_norm(x, weight, bias):
    orig_shape = x.shape
    d = orig_shape[-1]
    x2 = x.reshape(-1, d)                       # == input.view(-1, input.size(-1))
    rows = x2.shape[0]
    itemsize = jnp.dtype(x.dtype).itemsize

    w32 = weight.astype(jnp.float32)
    b32 = bias.astype(jnp.float32)

    # TODO(synk): for very large D (block bytes near the VMEM budget), split D
    # over a second "arbitrary" grid axis with scratch accumulators instead of
    # relying on minimum-height row blocks.

    pack = _LANES // d if (d < _LANES and _LANES % d == 0) else 1
    if pack > 1 and pack <= 16 and rows % pack == 0:
        # Lane-dense packed layout: `pack` logical rows per 128-lane slab row.
        width = d * pack
        xp = x2.reshape(rows // pack, width)    # free reshape (contiguous)
        wp = jnp.tile(w32, pack).reshape(1, width)
        bp = jnp.tile(b32, pack).reshape(1, width)
        tile_rows = _pick_tile_rows(rows // pack, width * itemsize, x.dtype)
        kernel = functools.partial(_layernorm_packed_kernel, d=d, pack=pack)
        out = _run(kernel, xp, wp, bp, tile_rows, rows, d, itemsize)
        return out.reshape(orig_shape)          # == .view(*input.size())

    tile_rows = _pick_tile_rows(rows, d * itemsize, x.dtype)
    out = _run(_layernorm_kernel, x2, w32.reshape(1, d), b32.reshape(1, d),
               tile_rows, rows, d, itemsize)
    return out.reshape(orig_shape)              # == .view(*input.size())


def reference_layer_norm(x, weight, bias):
    x32 = x.astype(jnp.float32)
    mean = jnp.mean(x32, axis=-1, keepdims=True)
    var = jnp.mean((x32 - mean) ** 2, axis=-1, keepdims=True)
    y = (x32 - mean) * jax.lax.rsqrt(var + EPS)
    return (y * weight + bias).astype(x.dtype)


if __name__ == "__main__":
    embedding_dim = 32
    batch, seq = 2, 8

    key = jax.random.PRNGKey(0)
    x = jax.random.normal(key, (batch, seq, embedding_dim), dtype=jnp.float32)

    # nn.LayerNorm default init: weight = ones, bias = zeros
    weight = jnp.ones((embedding_dim,), dtype=jnp.float32)
    bias = jnp.zeros((embedding_dim,), dtype=jnp.float32)

    out = layer_norm(x, weight, bias)
    jax.block_until_ready(out)
    ref = reference_layer_norm(x, weight, bias)
    assert out.shape == x.shape
    assert jnp.allclose(out, ref, atol=1e-5, rtol=1e-5)

    # Generic-path sanity check: D >= 128 (non-multiple of 128) and a row
    # count that is not tile-aligned, exercising the ragged tail-block masking
    # that replaced the wrapper pad/slice.
    k1, k2 = jax.random.split(jax.random.PRNGKey(1))
    d2 = 160
    x_b = jax.random.normal(k1, (3, 5, d2), dtype=jnp.float32)
    w_b = 1.0 + 0.1 * jax.random.normal(k2, (d2,), dtype=jnp.float32)
    b_b = jnp.linspace(-1.0, 1.0, d2, dtype=jnp.float32)
    out_b = layer_norm(x_b, w_b, b_b)
    jax.block_until_ready(out_b)
    ref_b = reference_layer_norm(x_b, w_b, b_b)
    assert out_b.shape == x_b.shape
    assert jnp.allclose(out_b, ref_b, atol=1e-5, rtol=1e-5)

    print("KERNEL_OK")
</pallas_src>

<mosaic_0001>
module attributes {stable_mosaic.version = 11 : i64} {
  func.func @_layernorm_packed_kernel(%arg0: i32, %arg1: memref<8x128xf32, #tpu.memory_space<vmem>>, %arg2: memref<1x128xf32, #tpu.memory_space<vmem>>, %arg3: memref<1x128xf32, #tpu.memory_space<vmem>>, %arg4: memref<8x128xf32, #tpu.memory_space<vmem>>) attributes {dimension_semantics = [#tpu.dimension_semantics<parallel>], iteration_bounds = array<i64: 1>, scalar_prefetch = 0 : i64, scratch_operands = 0 : i64, tpu.core_type = #tpu.core_type<tc>, window_params = [{transform_indices = @transform_0, window_bounds = array<i64: 8, 128>}, {pipeline_mode = #tpu.pipeline_mode<synchronous>, transform_indices = @transform_1, window_bounds = array<i64: 1, 128>}, {pipeline_mode = #tpu.pipeline_mode<synchronous>, transform_indices = @transform_2, window_bounds = array<i64: 1, 128>}, {transform_indices = @transform_3, window_bounds = array<i64: 8, 128>}]} {
    %c0 = arith.constant 0 : index
    %c0_0 = arith.constant 0 : index
    %0 = vector.load %arg1[%c0, %c0_0] : memref<8x128xf32, #tpu.memory_space<vmem>>, vector<8x128xf32>
    %1 = vector.extract_strided_slice %0 {offsets = [0, 0], sizes = [8, 32], strides = [1, 1]} : vector<8x128xf32> to vector<8x32xf32>
    %cst = arith.constant dense<0.000000e+00> : vector<8xf32>
    %2 = vector.multi_reduction <add>, %1, %cst [1] : vector<8x32xf32> to vector<8xf32>
    %3 = vector.shape_cast %2 : vector<8xf32> to vector<8x1xf32>
    %cst_1 = arith.constant 3.125000e-02 : f32
    %4 = vector.broadcast %cst_1 : f32 to vector<8x1xf32>
    %5 = arith.mulf %3, %4 : vector<8x1xf32>
    %6 = vector.broadcast %5 : vector<8x1xf32> to vector<8x32xf32>
    %7 = arith.subf %1, %6 : vector<8x32xf32>
    %8 = arith.mulf %7, %7 : vector<8x32xf32>
    %cst_2 = arith.constant dense<0.000000e+00> : vector<8xf32>
    %9 = vector.multi_reduction <add>, %8, %cst_2 [1] : vector<8x32xf32> to vector<8xf32>
    %10 = vector.shape_cast %9 : vector<8xf32> to vector<8x1xf32>
    %cst_3 = arith.constant 3.125000e-02 : f32
    %11 = vector.broadcast %cst_3 : f32 to vector<8x1xf32>
    %12 = arith.mulf %10, %11 : vector<8x1xf32>
    %cst_4 = arith.constant 9.99999974E-6 : f32
    %13 = vector.broadcast %cst_4 : f32 to vector<8x1xf32>
    %14 = arith.addf %12, %13 : vector<8x1xf32>
    %15 = math.rsqrt %14 : vector<8x1xf32>
    %16 = vector.broadcast %15 : vector<8x1xf32> to vector<8x32xf32>
    %17 = arith.mulf %7, %16 : vector<8x32xf32>
    %18 = vector.extract_strided_slice %0 {offsets = [0, 32], sizes = [8, 32], strides = [1, 1]} : vector<8x128xf32> to vector<8x32xf32>
    %cst_5 = arith.constant dense<0.000000e+00> : vector<8xf32>
    %19 = vector.multi_reduction <add>, %18, %cst_5 [1] : vector<8x32xf32> to vector<8xf32>
    %20 = vector.shape_cast %19 : vector<8xf32> to vector<8x1xf32>
    %cst_6 = arith.constant 3.125000e-02 : f32
    %21 = vector.broadcast %cst_6 : f32 to vector<8x1xf32>
    %22 = arith.mulf %20, %21 : vector<8x1xf32>
    %23 = vector.broadcast %22 : vector<8x1xf32> to vector<8x32xf32>
    %24 = arith.subf %18, %23 : vector<8x32xf32>
    %25 = arith.mulf %24, %24 : vector<8x32xf32>
    %cst_7 = arith.constant dense<0.000000e+00> : vector<8xf32>
    %26 = vector.multi_reduction <add>, %25, %cst_7 [1] : vector<8x32xf32> to vector<8xf32>
    %27 = vector.shape_cast %26 : vector<8xf32> to vector<8x1xf32>
    %cst_8 = arith.constant 3.125000e-02 : f32
    %28 = vector.broadcast %cst_8 : f32 to vector<8x1xf32>
    %29 = arith.mulf %27, %28 : vector<8x1xf32>
    %cst_9 = arith.constant 9.99999974E-6 : f32
    %30 = vector.broadcast %cst_9 : f32 to vector<8x1xf32>
    %31 = arith.addf %29, %30 : vector<8x1xf32>
    %32 = math.rsqrt %31 : vector<8x1xf32>
    %33 = vector.broadcast %32 : vector<8x1xf32> to vector<8x32xf32>
    %34 = arith.mulf %24, %33 : vector<8x32xf32>
    %35 = vector.extract_strided_slice %0 {offsets = [0, 64], sizes = [8, 32], strides = [1, 1]} : vector<8x128xf32> to vector<8x32xf32>
    %cst_10 = arith.constant dense<0.000000e+00> : vector<8xf32>
    %36 = vector.multi_reduction <add>, %35, %cst_10 [1] : vector<8x32xf32> to vector<8xf32>
    %37 = vector.shape_cast %36 : vector<8xf32> to vector<8x1xf32>
    %cst_11 = arith.constant 3.125000e-02 : f32
    %38 = vector.broadcast %cst_11 : f32 to vector<8x1xf32>
    %39 = arith.mulf %37, %38 : vector<8x1xf32>
    %40 = vector.broadcast %39 : vector<8x1xf32> to vector<8x32xf32>
    %41 = arith.subf %35, %40 : vector<8x32xf32>
    %42 = arith.mulf %41, %41 : vector<8x32xf32>
    %cst_12 = arith.constant dense<0.000000e+00> : vector<8xf32>
    %43 = vector.multi_reduction <add>, %42, %cst_12 [1] : vector<8x32xf32> to vector<8xf32>
    %44 = vector.shape_cast %43 : vector<8xf32> to vector<8x1xf32>
    %cst_13 = arith.constant 3.125000e-02 : f32
    %45 = vector.broadcast %cst_13 : f32 to vector<8x1xf32>
    %46 = arith.mulf %44, %45 : vector<8x1xf32>
    %cst_14 = arith.constant 9.99999974E-6 : f32
    %47 = vector.broadcast %cst_14 : f32 to vector<8x1xf32>
    %48 = arith.addf %46, %47 : vector<8x1xf32>
    %49 = math.rsqrt %48 : vector<8x1xf32>
    %50 = vector.broadcast %49 : vector<8x1xf32> to vector<8x32xf32>
    %51 = arith.mulf %41, %50 : vector<8x32xf32>
    %52 = vector.extract_strided_slice %0 {offsets = [0, 96], sizes = [8, 32], strides = [1, 1]} : vector<8x128xf32> to vector<8x32xf32>
    %cst_15 = arith.constant dense<0.000000e+00> : vector<8xf32>
    %53 = vector.multi_reduction <add>, %52, %cst_15 [1] : vector<8x32xf32> to vector<8xf32>
    %54 = vector.shape_cast %53 : vector<8xf32> to vector<8x1xf32>
    %cst_16 = arith.constant 3.125000e-02 : f32
    %55 = vector.broadcast %cst_16 : f32 to vector<8x1xf32>
    %56 = arith.mulf %54, %55 : vector<8x1xf32>
    %57 = vector.broadcast %56 : vector<8x1xf32> to vector<8x32xf32>
    %58 = arith.subf %52, %57 : vector<8x32xf32>
    %59 = arith.mulf %58, %58 : vector<8x32xf32>
    %cst_17 = arith.constant dense<0.000000e+00> : vector<8xf32>
    %60 = vector.multi_reduction <add>, %59, %cst_17 [1] : vector<8x32xf32> to vector<8xf32>
    %61 = vector.shape_cast %60 : vector<8xf32> to vector<8x1xf32>
    %cst_18 = arith.constant 3.125000e-02 : f32
    %62 = vector.broadcast %cst_18 : f32 to vector<8x1xf32>
    %63 = arith.mulf %61, %62 : vector<8x1xf32>
    %cst_19 = arith.constant 9.99999974E-6 : f32
    %64 = vector.broadcast %cst_19 : f32 to vector<8x1xf32>
    %65 = arith.addf %63, %64 : vector<8x1xf32>
    %66 = math.rsqrt %65 : vector<8x1xf32>
    %67 = vector.broadcast %66 : vector<8x1xf32> to vector<8x32xf32>
    %68 = arith.mulf %58, %67 : vector<8x32xf32>
    %69 = tpu.concatenate %17, %34, %51, %68 in 1 : vector<8x32xf32>, vector<8x32xf32>, vector<8x32xf32>, vector<8x32xf32> -> vector<8x128xf32>
    %c0_20 = arith.constant 0 : index
    %c0_21 = arith.constant 0 : index
    %70 = vector.load %arg2[%c0_20, %c0_21] : memref<1x128xf32, #tpu.memory_space<vmem>>, vector<1x128xf32>
    %71 = vector.broadcast %70 : vector<1x128xf32> to vector<8x128xf32>
    %72 = arith.mulf %69, %71 : vector<8x128xf32>
    %c0_22 = arith.constant 0 : index
    %c0_23 = arith.constant 0 : index
    %73 = vector.load %arg3[%c0_22, %c0_23] : memref<1x128xf32, #tpu.memory_space<vmem>>, vector<1x128xf32>
    %74 = vector.broadcast %73 : vector<1x128xf32> to vector<8x128xf32>
    %75 = arith.addf %72, %74 : vector<8x128xf32>
    %c0_24 = arith.constant 0 : index
    %c0_25 = arith.constant 0 : index
    %76 = vector.load %arg4[%c0_24, %c0_25] : memref<8x128xf32, #tpu.memory_space<vmem>>, vector<8x128xf32>
    tpu.vector_store %arg4[%c0_24, %c0_25], %75 {strides = array<i32>} : memref<8x128xf32, #tpu.memory_space<vmem>>, vector<8x128xf32>,
    return
  }
  func.func @transform_0(%arg0: i32) -> (i32, i32) {
    %c0_i32 = arith.constant 0 : i32
    %c0_i32_0 = arith.constant 0 : i32
    return %arg0, %c0_i32 : i32, i32
  }
  func.func @transform_1(%arg0: i32) -> (i32, i32) {
    %c0_i32 = arith.constant 0 : i32
    %c0_i32_0 = arith.constant 0 : i32
    %c0_i32_1 = arith.constant 0 : i32
    return %c0_i32, %c0_i32_0 : i32, i32
  }
  func.func @transform_2(%arg0: i32) -> (i32, i32) {
    %c0_i32 = arith.constant 0 : i32
    %c0_i32_0 = arith.constant 0 : i32
    %c0_i32_1 = arith.constant 0 : i32
    return %c0_i32, %c0_i32_0 : i32, i32
  }
  func.func @transform_3(%arg0: i32) -> (i32, i32) {
    %c0_i32 = arith.constant 0 : i32
    %c0_i32_0 = arith.constant 0 : i32
    return %arg0, %c0_i32 : i32, i32
  }
}

</mosaic_0001>

<llo_original>
// kernel: tile.13
$region0: #{tile.13}
  #allocation0 [shape = 's32[1]{0}', space=sflag, size = 0x4, scoped, tag = 'scoped memory for tile.13']
  %s0 = inlined_call_operand.vmem [shape: f32[32], index: 0, kind: input, shape index: {}]
  %s1 = inlined_call_operand.vmem [shape: f32[4,32], index: 1, kind: output, shape index: {}]
  // Predicated region
  $region2: #{tile.13} parent=0 // pred_check
    _
  $region3: #{tile.13} parent=0 // pred_check_branch
    %3 = sbr.rel (0) target = $region5
  $region4: #{tile.13} parent=0 // pred_region
    _
  $region5: #{tile.13} parent=0 // pred_fallthru
    _
  %v4 = vld [vmem:[%s0] ss:$0 sm:$0xff]
  %5 = vst [vmem:[%s1] sm:$0xf] %v4

// kernel: tile.14
$region0: #{tile.14}
  %s0 = inlined_call_operand.vmem [shape: f32[4,32], index: 0, kind: input, shape index: {}]
  %s1 = inlined_call_operand.vmem [shape: f32[1,128], index: 1, kind: output, shape index: {}]
  $region1: #{tile.14} parent=0
    #allocation0 [shape = 'u8[4096]{0}', space=vmem, size = 0x1000, scoped, tag = 'scoped mem for output reshape']
    #allocation1 [shape = 'u8[4096]{0}', space=vmem, size = 0x1000, scoped, tag = 'scoped mem for input reshape']
    %s3 = sshllo.u32 0, 4
    %v4 = vld [vmem:[%s0] sm:%s3]
    %5 = vst [vmem:[#allocation1] sm:%s3] %v4
    %v6 = vld [vmem:[#allocation1] sm:$0x1]
    %vm7 = vcmask 261120
    %8 = vst.msk [vmem:[#allocation0] sm:$0x1] %vm7, %v6
    %s9 = scalar_lea.vmem [#allocation1], 3
    %v10 = vld [vmem:[%s9] sm:$0x1]
    %11 = vrot.lane.b32.xlu0 %v10, 96
    %v12 = vpop.permute.xlu0 %11
    %vm13 = vcmask 1048320
    %14 = vst.msk [vmem:[#allocation0] sm:$0x1] %vm13, %v12
    %s15 = scalar_lea.vmem [#allocation1], 2
    %v16 = vld [vmem:[%s15] sm:$0x1]
    %17 = vrot.lane.b32.xlu0 %v16, 64
    %v18 = vpop.permute.xlu0 %17
    %vm19 = vcmask 785920
    %20 = vst.msk [vmem:[#allocation0] sm:$0x1] %vm19, %v18
    %s21 = scalar_lea.vmem [#allocation1], 1
    %v22 = vld [vmem:[%s21] sm:$0x1]
    %23 = vrot.lane.b32.xlu0 %v22, 32
    %v24 = vpop.permute.xlu0 %23
    %vm25 = vcmask 523520
    %26 = vst.msk [vmem:[#allocation0] sm:$0x1] %vm25, %v24
    %s28 = sshllo.u32 0, 1
    %v30 = vld [vmem:[#allocation0] sm:%s28]
    %s31 = sshllo.u32 0, 1
    %32 = vst [vmem:[%s1] sm:%s31] %v30

// kernel: layer_norm.1
$region0: #{layer_norm.1}
  #allocation0 [shape = 'u32[]', space=smem, size = 0x4, offset = 0x4, fixed_abs, tag = 'smem constant byte address 0x4 - core index']
  #allocation1 [shape = 'u32[144,128]{1,0:T(1,128)}', space=vmem, size = 0x12000, scoped, tag = 'internal scratch']
  %s0 = inlined_call_operand.vmem [shape: f32[4,128], index: 0, kind: input, shape index: {}]
  %s1 = inlined_call_operand.vmem [shape: f32[1,128], index: 1, kind: input, shape index: {}]
  %s2 = inlined_call_operand.vmem [shape: f32[1,128], index: 2, kind: input, shape index: {}]
  %s3 = inlined_call_operand.vmem [shape: f32[4,128], index: 3, kind: output, shape index: {}]
  %s4 = sld [smem:[#allocation0]]
  $region52: #{layer_norm.1} parent=0
    _
  %s6 = ssub.s32 1, %s4
  %s7 = scalar_select 0, %s6, %s4
  $region1: #{layer_norm.1} parent=0
    #allocation2 [shape = 'u8[4096]{0}', space=vmem, size = 0x1000, scoped, tag = 'output window, operand 0, single buffered']
    // Predicated region
    $region2: #{layer_norm.1} parent=1 // pred_check
      _
    $region3: #{layer_norm.1} parent=1 // pred_check_branch
      %9 = sbr.rel (0) target = $region5
    $region4: #{layer_norm.1} parent=1 // pred_region
      _
    $region5: #{layer_norm.1} parent=1 // pred_fallthru
      _
    // Predicated region
    $region6: #{layer_norm.1} parent=1 // pred_check
      _
    $region7: #{layer_norm.1} parent=1 // pred_check_branch
      %11 = sbr.rel (0) target = $region9
    $region8: #{layer_norm.1} parent=1 // pred_region
      _
    $region9: #{layer_norm.1} parent=1 // pred_fallthru
      _
    // Predicated region
    $region10: #{layer_norm.1} parent=1 // pred_check
      _
    $region11: #{layer_norm.1} parent=1 // pred_check_branch
      %13 = sbr.rel (0) target = $region13
    $region12: #{layer_norm.1} parent=1 // pred_region
      _
    $region13: #{layer_norm.1} parent=1 // pred_fallthru
      _
    %v14 = vld [vmem:[%s0] sm:$0xff]
    %vm15 = vcmask 261120
    %v16 = vsel %vm15, %v14, 0.0
    %17 = vadd.xlane.f32.xlu0 %v16
    %v18 = vpop.xlane.xlu0 %17
    %v19 = vmul.f32 %v18, 0.03125
    %v20 = vsub.f32 %v14, %v19
    %v21 = vmul.f32 %v20, %v20
    %v22 = vsel %vm15, %v21, 0.0
    %23 = vadd.xlane.f32.xlu0 %v22
    %v24 = vpop.xlane.xlu0 %23
    %v25 = vmul.f32 %v24, 0.03125
    %v26 = vadd.f32 %v25, 1e-05
    %v27 = vrsqrt.pop %v26
    %v28 = vmul.f32 %v20, %v27
    %30 = vrot.lane.b32.xlu0 %v14, 96
    %v31 = vpop.permute.xlu0 %30
    %v33 = vsel %vm15, %v31, 0.0
    %34 = vadd.xlane.f32.xlu0 %v33
    %v35 = vpop.xlane.xlu0 %34
    %v36 = vmul.f32 %v35, 0.03125
    %v37 = vsub.f32 %v14, %v36
    %v38 = vmul.f32 %v37, %v37
    %40 = vrot.lane.b32.xlu0 %v38, 96
    %v41 = vpop.permute.xlu0 %40
    %v43 = vsel %vm15, %v41, 0.0
    %44 = vadd.xlane.f32.xlu0 %v43
    %v45 = vpop.xlane.xlu0 %44
    %v46 = vmul.f32 %v45, 0.03125
    %v47 = vadd.f32 %v46, 1e-05
    %v48 = vrsqrt.pop %v47
    %v49 = vmul.f32 %v37, %v48
    %50 = vrot.lane.b32.xlu0 %v14, 64
    %v51 = vpop.permute.xlu0 %50
    %v53 = vsel %vm15, %v51, 0.0
    %54 = vadd.xlane.f32.xlu0 %v53
    %v55 = vpop.xlane.xlu0 %54
    %v56 = vmul.f32 %v55, 0.03125
    %v57 = vsub.f32 %v14, %v56
    %v58 = vmul.f32 %v57, %v57
    %60 = vrot.lane.b32.xlu0 %v58, 64
    %v61 = vpop.permute.xlu0 %60
    %v63 = vsel %vm15, %v61, 0.0
    %64 = vadd.xlane.f32.xlu0 %v63
    %v65 = vpop.xlane.xlu0 %64
    %v66 = vmul.f32 %v65, 0.03125
    %v67 = vadd.f32 %v66, 1e-05
    %v68 = vrsqrt.pop %v67
    %v69 = vmul.f32 %v57, %v68
    %70 = vrot.lane.b32.xlu0 %v14, 32
    %v71 = vpop.permute.xlu0 %70
    %v73 = vsel %vm15, %v71, 0.0
    %74 = vadd.xlane.f32.xlu0 %v73
    %v75 = vpop.xlane.xlu0 %74
    %v76 = vmul.f32 %v75, 0.03125
    %v77 = vsub.f32 %v14, %v76
    %v78 = vmul.f32 %v77, %v77
    %80 = vrot.lane.b32.xlu0 %v78, 32
    %v81 = vpop.permute.xlu0 %80
    %v83 = vsel %vm15, %v81, 0.0
    %84 = vadd.xlane.f32.xlu0 %v83
    %v85 = vpop.xlane.xlu0 %84
    %v86 = vmul.f32 %v85, 0.03125
    %v87 = vadd.f32 %v86, 1e-05
    %v88 = vrsqrt.pop %v87
    %v89 = vmul.f32 %v77, %v88
    %v90 = vsel %vm15, %v28, %v49
    %vm91 = vcmask 523264
    %v92 = vsel %vm91, %v90, %v69
    %vm93 = vcmask 785408
    %v94 = vsel %vm93, %v92, %v89
    %v95 = vld [vmem:[%s1] sm:$0x1]
    %v97 = vlaneseq
    %v98 = vshrl.u32 %v97, 7
    %v99 = vsub.s32 0, %v98
    %v100 = vrot.slane %v95, %v99
    %v102 = vmul.f32 %v94, %v100
    %v103 = vld [vmem:[%s2] sm:$0x1]
    %v105 = vlaneseq
    %v106 = vshrl.u32 %v105, 7
    %v107 = vsub.s32 0, %v106
    %v108 = vrot.slane %v103, %v107
    %v110 = vadd.f32 %v102, %v108
    %111 = vst [vmem:[#allocation2] sm:$0xff] %v110
    // Predicated region
    $region14: #{layer_norm.1} parent=1 // pred_check
      _
    $region15: #{layer_norm.1} parent=1 // pred_check_branch
      %113 = sbr.rel (0) target = $region17
    $region16: #{layer_norm.1} parent=1 // pred_region
      // Predicated region
      $region18: #{layer_norm.1} parent=16 // pred_check
        _
      $region19: #{layer_norm.1} parent=16 // pred_check_branch
        %115 = sbr.rel (0) target = $region21
      $region20: #{layer_norm.1} parent=16 // pred_region
        // Predicated region
        $region22: #{layer_norm.1} parent=20 // pred_check
          _
        $region23: #{layer_norm.1} parent=20 // pred_check_branch
          %117 = sbr.rel target = $region25
        $region24: #{layer_norm.1} parent=20 // pred_region
          // Predicated region
          $region37: #{layer_norm.1} parent=24 // pred_check
            _
          $region38: #{layer_norm.1} parent=24 // pred_check_branch
            %132 = sbr.rel (0) target = $region40
          $region39: #{layer_norm.1} parent=24 // pred_region
            loop: start=0, step=1, limit=1
            $region41: #{layer_norm.1} parent=39 // loop_pre_header
              _
            $region42: #{layer_norm.1} parent=39 // loop_header
              %s135 = sphi 0, %s139
              %p136 = scmp.ge.s32.totalorder %s135, 1
              %s140 = sphi [#allocation2], [#allocation2]
              %s141 = sphi %s3, %s3
            $region43: #{layer_norm.1} parent=39 // loop_header_branch
              %138 = sbr.rel (%p136) target = $region47
            $region44: #{layer_norm.1} parent=39 // loop_body
              %v142 = vld [vmem:[%s140] sm:$0xf]
              %143 = vst [vmem:[%s141] sm:$0xf] %v142
            $region45: #{layer_norm.1} parent=39 // loop_footer
              %s139 = sadd.s32 1, %s135
            $region46: #{layer_norm.1} parent=39 // loop_footer_branch
              %134 = sbr.rel target = $region42
            $region47: #{layer_norm.1} parent=39 // loop_exit
              _
          $region40: #{layer_norm.1} parent=24 // pred_fallthru
            _
        $region25: #{layer_norm.1} parent=20 // pred_fallthru
          _
        // Predicated region
        $region26: #{layer_norm.1} parent=20 // pred_check
          _
        $region27: #{layer_norm.1} parent=20 // pred_check_branch
          %119 = sbr.rel (0) target = $region29
        $region28: #{layer_norm.1} parent=20 // pred_region
          loop: start=0, step=1, limit=1
          $region30: #{layer_norm.1} parent=28 // loop_pre_header
            _
          $region31: #{layer_norm.1} parent=28 // loop_header
            %s122 = sphi 0, %s126
            %p123 = scmp.ge.s32.totalorder %s122, 1
            %s127 = sphi [#allocation2], [#allocation2]
            %s128 = sphi %s3, %s3
          $region32: #{layer_norm.1} parent=28 // loop_header_branch
            %125 = sbr.rel (%p123) target = $region36
          $region33: #{layer_norm.1} parent=28 // loop_body
            %v129 = vld [vmem:[%s127] sm:$0xf]
            %130 = vst [vmem:[%s128] sm:$0xf] %v129
          $region34: #{layer_norm.1} parent=28 // loop_footer
            %s126 = sadd.s32 1, %s122
          $region35: #{layer_norm.1} parent=28 // loop_footer_branch
            %121 = sbr.rel target = $region31
          $region36: #{layer_norm.1} parent=28 // loop_exit
            _
        $region29: #{layer_norm.1} parent=20 // pred_fallthru
          _
      $region21: #{layer_norm.1} parent=16 // pred_fallthru
        _
      %144 = vnop
    $region17: #{layer_norm.1} parent=1 // pred_fallthru
      _
    // Predicated region
    $region48: #{layer_norm.1} parent=1 // pred_check
      _
    $region49: #{layer_norm.1} parent=1 // pred_check_branch
      %146 = sbr.rel (0) target = $region51
    $region50: #{layer_norm.1} parent=1 // pred_region
      _
    $region51: #{layer_norm.1} parent=1 // pred_fallthru
      _

</llo_original>
